<compile_context>
chip_gen: v5e
topology: v5e:2x2
jax: 0.10.0
libtpu: 0.0.40
codegen_flags: <defaults>
</compile_context>

<pallas_src>
import functools
import math

import jax
import jax.numpy as jnp
from jax import lax
from jax.experimental import pallas as pl
from jax.experimental.pallas import tpu as pltpu


def _round_up(a, m):
    return (a + m - 1) // m * m


def _conv_block_kernel(x_ref, w_ref, b_ref, o_ref, *, F, TL):
    # x_ref: (C2p, L_in)   full (padded) length of the current batch element,
    #                      resident in VMEM across all L_out tiles of it.
    # w_ref: (F, H, C2p)   prescaled weights (resident, constant index map).
    # b_ref: (H, 1)        prescaled bias (resident, constant index map).
    # o_ref: (H, TL)       lane-dense output tile (TL is a multiple of 128).
    j = pl.program_id(1)
    start = pl.multiple_of(j * TL, TL)            # 128-aligned window start
    xw = x_ref[:, pl.ds(start, TL + F - 1)]       # (C2p, TL + F - 1) window

    acc = jnp.zeros(o_ref.shape, jnp.float32)
    for f in range(F):                            # small F, fully unrolled
        acc = acc + jnp.dot(
            w_ref[f],                             # (H, C2p)
            lax.slice_in_dim(xw, f, f + TL, axis=1),  # (C2p, TL) shifted slice
            preferred_element_type=jnp.float32,
        )
    o_ref[...] = jnp.maximum(acc + b_ref[...], 0.0).astype(o_ref.dtype)


def conv_block_nt_1d(x, w, b, stride):
    """Pallas implementation of ConvBlockNT_1d.forward.

    x: (N, C_in, L) float32, w: (H, C_in, F) float32, b: (H,) float32
    returns (N, H, L_out) float32
    """
    N, C, L = x.shape
    H, _, F = w.shape
    s = int(stride)

    # Circular padding, matching F.pad(..., mode='circular') sizes.
    if F % 2 != 0:
        pad_l = pad_r = (F - 1) // 2
    else:
        pad_l, pad_r = F // 2 - 1, F // 2
    x_pad = jnp.pad(x, ((0, 0), (0, 0), (pad_l, pad_r)), mode="wrap")
    Lp = L + pad_l + pad_r
    L_out = (Lp - F) // s + 1

    # Fold NTK init scale (w / sqrt(C*F)) and the sqrt(F) post-scale into the
    # parameters: sqrt(F) * relu(Wx/sqrt(CF) + b) == relu((W/sqrt(C)) x + sqrt(F) b).
    w_eff = w * (1.0 / jnp.sqrt(jnp.float32(C)))
    b_eff = b * jnp.sqrt(jnp.float32(F))

    # Space-to-depth: turn a stride-s conv into a stride-1 conv with C*s channels
    # and ceil(F/s) taps (pure reshape/transpose, no data duplication).
    if s == 1:
        C2, F2, L2 = C, F, Lp
        x2 = x_pad                                        # (N, C, Lp)
        w_k = jnp.transpose(w_eff, (2, 0, 1))             # (F, H, C)
    else:
        F2 = -(-F // s)
        L2 = -(-Lp // s)
        C2 = C * s
        xp = jnp.pad(x_pad, ((0, 0), (0, 0), (0, L2 * s - Lp)))
        x2 = jnp.transpose(xp.reshape(N, C, L2, s), (0, 1, 3, 2)).reshape(N, C2, L2)
        wp = jnp.pad(w_eff, ((0, 0), (0, 0), (0, F2 * s - F)))
        w_k = jnp.transpose(wp.reshape(H, C, F2, s), (2, 0, 1, 3)).reshape(F2, H, C2)

    # Pad contracted channel dim to a multiple of 8 sublanes (zeros -> no effect).
    C2p = _round_up(C2, 8)
    if C2p != C2:
        x2 = jnp.pad(x2, ((0, 0), (0, C2p - C2), (0, 0)))
        w_k = jnp.pad(w_k, ((0, 0), (0, 0), (0, C2p - C2)))

    # Lane-dense output tiling over L_out.
    TL = min(512, _round_up(max(L_out, 1), 128))
    num_tiles = pl.cdiv(L_out, TL)
    L_out_p = num_tiles * TL

    # Make every in-kernel window [j*TL, j*TL + TL + F2 - 1) in-bounds.
    L_in = max(L2, L_out_p + F2 - 1)
    if L_in != L2:
        x2 = jnp.pad(x2, ((0, 0), (0, 0), (0, L_in - L2)))

    b_k = b_eff.reshape(H, 1)

    # Explicit scoped-VMEM budget from the chosen tiles (double-buffered blocks +
    # accumulator), clamped to be safe on 16/32 MiB defaults and v7x's 64 MiB.
    itemsize = 4
    est = 2 * (C2p * L_in + F2 * H * C2p + H + 2 * H * TL) * itemsize
    vmem_limit = int(min(max(est + (8 << 20), 32 << 20), 64 << 20))

    out = pl.pallas_call(
        functools.partial(_conv_block_kernel, F=F2, TL=TL),
        out_shape=jax.ShapeDtypeStruct((N, H, L_out_p), x.dtype),
        grid_spec=pltpu.PrefetchScalarGridSpec(
            num_scalar_prefetch=0,
            grid=(N, num_tiles),
            in_specs=[
                pl.BlockSpec((None, C2p, L_in), lambda n, j: (n, 0, 0)),
                pl.BlockSpec((F2, H, C2p), lambda n, j: (0, 0, 0)),
                pl.BlockSpec((H, 1), lambda n, j: (0, 0)),
            ],
            out_specs=pl.BlockSpec((None, H, TL), lambda n, j: (n, 0, j)),
        ),
        compiler_params=pltpu.CompilerParams(
            dimension_semantics=("parallel", "parallel"),
            vmem_limit_bytes=vmem_limit,
        ),
    )(x2, w_k, b_k)

    return out[:, :, :L_out]


def _reference_forward(x, w, b, stride):
    """Pure-JAX reference matching the PyTorch module semantics."""
    N, C, L = x.shape
    H, _, F = w.shape
    if F % 2 != 0:
        pad_l = pad_r = (F - 1) // 2
    else:
        pad_l, pad_r = F // 2 - 1, F // 2
    x_pad = jnp.pad(x, ((0, 0), (0, 0), (pad_l, pad_r)), mode="wrap")
    y = lax.conv_general_dilated(
        x_pad,
        w / jnp.sqrt(jnp.float32(C * F)),
        window_strides=(stride,),
        padding="VALID",
        dimension_numbers=("NCH", "OIH", "NCH"),
    )
    y = y + b[None, :, None]
    return math.sqrt(F) * jnp.maximum(y, 0.0)


if __name__ == "__main__":
    key = jax.random.PRNGKey(0)

    # Config 1: batch=2, input_ch=4, length=16, hidden=8, filter=3, stride=1.
    N, C, L, H, F, S = 2, 4, 16, 8, 3, 1
    k1, k2, k3, key = jax.random.split(key, 4)
    x = jax.random.normal(k1, (N, C, L), dtype=jnp.float32)
    w = jax.random.normal(k2, (H, C, F), dtype=jnp.float32)
    b = jax.random.normal(k3, (H,), dtype=jnp.float32)
    out = jax.block_until_ready(conv_block_nt_1d(x, w, b, S))
    ref = _reference_forward(x, w, b, S)
    assert out.shape == ref.shape, (out.shape, ref.shape)
    assert jnp.allclose(out, ref, atol=1e-5, rtol=1e-5), "mismatch vs reference (stride=1)"

    # Config 2: even filter + stride 2 (exercises even-pad and space-to-depth paths).
    F2_, S2 = 4, 2
    k1, k2, k3, key = jax.random.split(key, 4)
    x_b = jax.random.normal(k1, (N, C, L), dtype=jnp.float32)
    w_b = jax.random.normal(k2, (H, C, F2_), dtype=jnp.float32)
    b_b = jax.random.normal(k3, (H,), dtype=jnp.float32)
    out_b = jax.block_until_ready(conv_block_nt_1d(x_b, w_b, b_b, S2))
    ref_b = _reference_forward(x_b, w_b, b_b, S2)
    assert out_b.shape == ref_b.shape, (out_b.shape, ref_b.shape)
    assert jnp.allclose(out_b, ref_b, atol=1e-5, rtol=1e-5), "mismatch vs reference (stride=2)"

    print("KERNEL_OK")
</pallas_src>

<mosaic_0001>
module attributes {stable_mosaic.version = 11 : i64} {
  func.func @_conv_block_kernel(%arg0: i32, %arg1: i32, %arg2: memref<1x8x130xf32, #tpu.memory_space<vmem>>, %arg3: memref<3x8x8xf32, #tpu.memory_space<vmem>>, %arg4: memref<8x1xf32, #tpu.memory_space<vmem>>, %arg5: memref<1x8x128xf32, #tpu.memory_space<vmem>>) attributes {dimension_semantics = [#tpu.dimension_semantics<parallel>, #tpu.dimension_semantics<parallel>], iteration_bounds = array<i64: 2, 1>, scalar_prefetch = 0 : i64, scratch_operands = 0 : i64, tpu.core_type = #tpu.core_type<tc>, window_params = [{transform_indices = @transform_0, window_bounds = array<i64: 1, 8, 130>}, {pipeline_mode = #tpu.pipeline_mode<synchronous>, transform_indices = @transform_1, window_bounds = array<i64: 3, 8, 8>}, {pipeline_mode = #tpu.pipeline_mode<synchronous>, transform_indices = @transform_2, window_bounds = array<i64: 8, 1>}, {transform_indices = @transform_3, window_bounds = array<i64: 1, 8, 128>}]} {
    %c128_i32 = arith.constant 128 : i32
    %0 = arith.muli %arg1, %c128_i32 : i32
    %1 = tpu.assume_multiple %0, 128 : i32
    %c0 = arith.constant 0 : index
    %c0_0 = arith.constant 0 : index
    %2 = arith.index_cast %1 : i32 to index
    %3 = vector.load %arg2[%c0, %c0_0, %2] : memref<1x8x130xf32, #tpu.memory_space<vmem>>, vector<1x8x130xf32>
    %4 = vector.shape_cast %3 : vector<1x8x130xf32> to vector<8x130xf32>
    %cst = arith.constant 0.000000e+00 : f32
    %5 = vector.broadcast %cst : f32 to vector<8x128xf32>
    %c0_1 = arith.constant 0 : index
    %c0_2 = arith.constant 0 : index
    %c0_3 = arith.constant 0 : index
    %6 = vector.load %arg3[%c0_1, %c0_2, %c0_3] : memref<3x8x8xf32, #tpu.memory_space<vmem>>, vector<1x8x8xf32>
    %7 = vector.shape_cast %6 : vector<1x8x8xf32> to vector<8x8xf32>
    %8 = vector.extract_strided_slice %4 {offsets = [0, 0], sizes = [8, 128], strides = [1, 1]} : vector<8x130xf32> to vector<8x128xf32>
    %cst_4 = arith.constant dense<0.000000e+00> : vector<8x128xf32>
    %9 = tpu.matmul %7, %8, %cst_4 {dimension_numbers = #tpu.dot_dimension_numbers<[1], [0], [0], [1], [0, 0, 1, 1], [], []>} : vector<8x8xf32>, vector<8x128xf32>, vector<8x128xf32> -> vector<8x128xf32>
    %10 = arith.addf %5, %9 : vector<8x128xf32>
    %c1 = arith.constant 1 : index
    %c0_5 = arith.constant 0 : index
    %c0_6 = arith.constant 0 : index
    %11 = vector.load %arg3[%c1, %c0_5, %c0_6] : memref<3x8x8xf32, #tpu.memory_space<vmem>>, vector<1x8x8xf32>
    %12 = vector.shape_cast %11 : vector<1x8x8xf32> to vector<8x8xf32>
    %13 = vector.extract_strided_slice %4 {offsets = [0, 1], sizes = [8, 128], strides = [1, 1]} : vector<8x130xf32> to vector<8x128xf32>
    %cst_7 = arith.constant dense<0.000000e+00> : vector<8x128xf32>
    %14 = tpu.matmul %12, %13, %cst_7 {dimension_numbers = #tpu.dot_dimension_numbers<[1], [0], [0], [1], [0, 0, 1, 1], [], []>} : vector<8x8xf32>, vector<8x128xf32>, vector<8x128xf32> -> vector<8x128xf32>
    %15 = arith.addf %10, %14 : vector<8x128xf32>
    %c2 = arith.constant 2 : index
    %c0_8 = arith.constant 0 : index
    %c0_9 = arith.constant 0 : index
    %16 = vector.load %arg3[%c2, %c0_8, %c0_9] : memref<3x8x8xf32, #tpu.memory_space<vmem>>, vector<1x8x8xf32>
    %17 = vector.shape_cast %16 : vector<1x8x8xf32> to vector<8x8xf32>
    %18 = vector.extract_strided_slice %4 {offsets = [0, 2], sizes = [8, 128], strides = [1, 1]} : vector<8x130xf32> to vector<8x128xf32>
    %cst_10 = arith.constant dense<0.000000e+00> : vector<8x128xf32>
    %19 = tpu.matmul %17, %18, %cst_10 {dimension_numbers = #tpu.dot_dimension_numbers<[1], [0], [0], [1], [0, 0, 1, 1], [], []>} : vector<8x8xf32>, vector<8x128xf32>, vector<8x128xf32> -> vector<8x128xf32>
    %20 = arith.addf %15, %19 : vector<8x128xf32>
    %c0_11 = arith.constant 0 : index
    %c0_12 = arith.constant 0 : index
    %21 = vector.load %arg4[%c0_11, %c0_12] : memref<8x1xf32, #tpu.memory_space<vmem>>, vector<8x1xf32>
    %22 = vector.broadcast %21 : vector<8x1xf32> to vector<8x128xf32>
    %23 = arith.addf %20, %22 : vector<8x128xf32>
    %cst_13 = arith.constant 0.000000e+00 : f32
    %24 = vector.broadcast %cst_13 : f32 to vector<8x128xf32>
    %25 = arith.maximumf %23, %24 : vector<8x128xf32>
    %c0_14 = arith.constant 0 : index
    %c0_15 = arith.constant 0 : index
    %c0_16 = arith.constant 0 : index
    %26 = vector.load %arg5[%c0_14, %c0_15, %c0_16] : memref<1x8x128xf32, #tpu.memory_space<vmem>>, vector<1x8x128xf32>
    %27 = vector.shape_cast %26 : vector<1x8x128xf32> to vector<8x128xf32>
    %28 = vector.shape_cast %25 : vector<8x128xf32> to vector<1x8x128xf32>
    tpu.vector_store %arg5[%c0_14, %c0_15, %c0_16], %28 {strides = array<i32>} : memref<1x8x128xf32, #tpu.memory_space<vmem>>, vector<1x8x128xf32>,
    return
  }
  func.func @transform_0(%arg0: i32, %arg1: i32) -> (i32, i32, i32) {
    %c0_i32 = arith.constant 0 : i32
    %c0_i32_0 = arith.constant 0 : i32
    %c0_i32_1 = arith.constant 0 : i32
    return %arg0, %c0_i32, %c0_i32_0 : i32, i32, i32
  }
  func.func @transform_1(%arg0: i32, %arg1: i32) -> (i32, i32, i32) {
    %c0_i32 = arith.constant 0 : i32
    %c0_i32_0 = arith.constant 0 : i32
    %c0_i32_1 = arith.constant 0 : i32
    %c0_i32_2 = arith.constant 0 : i32
    return %c0_i32, %c0_i32_0, %c0_i32_1 : i32, i32, i32
  }
  func.func @transform_2(%arg0: i32, %arg1: i32) -> (i32, i32) {
    %c0_i32 = arith.constant 0 : i32
    %c0_i32_0 = arith.constant 0 : i32
    %c0_i32_1 = arith.constant 0 : i32
    return %c0_i32, %c0_i32_0 : i32, i32
  }
  func.func @transform_3(%arg0: i32, %arg1: i32) -> (i32, i32, i32) {
    %c0_i32 = arith.constant 0 : i32
    %c0_i32_0 = arith.constant 0 : i32
    return %arg0, %c0_i32, %arg1 : i32, i32, i32
  }
}

</mosaic_0001>

<llo_original>
// kernel: tpu_custom_call.1
$region0: #{tpu_custom_call.1}
  #allocation0 [shape = 'u32[]', space=smem, size = 0x4, offset = 0x4, fixed_abs, tag = 'smem constant byte address 0x4 - core index']
  #allocation1 [shape = 'u32[72,128]{1,0:T(1,128)}', space=vmem, size = 0x9000, scoped, tag = 'internal scratch']
  %s0 = inlined_call_operand.hbm [shape: f32[2,8,130], index: 0, kind: input, shape index: {}]
  %s1 = inlined_call_operand.hbm [shape: f32[3,8,8], index: 1, kind: input, shape index: {}]
  %s2 = inlined_call_operand.vmem [shape: f32[8,1], index: 2, kind: input, shape index: {}]
  %s3 = inlined_call_operand.hbm [shape: f32[2,8,128], index: 3, kind: output, shape index: {}]
  %s4 = sld [smem:[#allocation0]]
  $region53: #{tpu_custom_call.1} parent=0
    _
  %s6 = ssub.s32 1, %s4
  %s7 = scalar_select 0, %s6, %s4
  $region1: #{tpu_custom_call.1} parent=0
    #allocation2 [shape = 'u8[16384]{0}', space=vmem, size = 0x4000, scoped, tag = 'input window, operand 0']
    #allocation3 [shape = 's32[2]{0}', space=sflag, size = 0x8, scoped, tag = 'scoped memory for tpu_custom_call.1']
    #allocation4 [shape = 's32[2]{0}', space=sflag, size = 0x8, scoped, tag = 'scoped memory for tpu_custom_call.1']
    #allocation5 [shape = 'u8[12288]{0}', space=vmem, size = 0x3000, scoped, tag = 'input window, operand 1, single buffered']
    #allocation6 [shape = 's32[1]{0}', space=sflag, size = 0x4, scoped, tag = 'scoped memory for tpu_custom_call.1']
    #allocation7 [shape = 'u8[8192]{0}', space=vmem, size = 0x2000, scoped, tag = 'output window, operand 0']
    %8 = vsyncpa [#allocation3], 0
    %s9 = scalar_lea.sflag [#allocation3], 1
    %10 = vsyncpa %s9, 0
    %11 = vsyncpa [#allocation6], 0
    %12 = vsyncpa [#allocation4], 0
    %s13 = scalar_lea.sflag [#allocation4], 1
    %14 = vsyncpa %s13, 0
    loop: start=0, step=1, limit=4
    $region2: #{tpu_custom_call.1} parent=1 // loop_pre_header
      _
    $region3: #{tpu_custom_call.1} parent=1 // loop_header
      %s16 = sphi 0, %s20
      %p17 = scmp.ge.s32.totalorder %s16, 4
      %s23 = sphi 0, %s35
      %s24 = sphi 0, %s31
      %s25 = sphi 0, %s23
      %s26 = sphi 0, %s24
      %s27 = sphi 0, %s25
      %s28 = sphi 0, %s26
      %s38 = sphi 0, %s40
      %s41 = sphi 0, %s38
      %s42 = sphi 0, %s41
      %s58 = sphi 0, %s42
      %s62 = sphi 0, %s62
      %s64 = sphi 0, %s62
      %s65 = sphi 0, %s64
      %s79 = sphi 0, %s65
      %s83 = sphi 0, %s83
      %s85 = sphi 0, %s83
      %s86 = sphi 0, %s85
      %s100 = sphi 0, %s86
      %s108 = sphi 0, %s110
      %s111 = sphi 0, %s108
      %s112 = sphi 0, %s111
      %s128 = sphi 0, %s112
    $region4: #{tpu_custom_call.1} parent=1 // loop_header_branch
      %19 = sbr.rel (%p17) target = $region8
    $region5: #{tpu_custom_call.1} parent=1 // loop_body
      %s21 = ssub.s32 %s16, 1
      %s22 = ssub.s32 %s16, 2
      %s29 = sadd.s32 1, %s24
      %p30 = scmp.ge.s32.totalorder %s29, 1
      %s31 = scalar_select %p30, 0, %s29
      %s32 = sadd.s32 1, %s23
      %s33 = scalar_select %p30, %s32, %s23
      %p34 = scmp.ge.s32.totalorder %s33, 2
      %s35 = scalar_select %p34, 0, %s33
      %s36 = ssub.s32 %s23, %s35
      %p37 = scmp.eq.s32.totalorder %s36, 0
      %s39 = sadd.s32 %s38, 1
      %s40 = scalar_select %p37, %s38, %s39
      %p43 = pneg %p37
      %p44 = scmp.eq.s32.totalorder %s16, 1
      %p45 = por %p43, %p44
      %p46 = scmp.ne.s32.totalorder %s38, %s41
      %p47 = scmp.eq.s32.totalorder %s16, 0
      %p48 = por %p46, %p47
      %p49 = scmp.ne.s32.totalorder %s38, %s41
      %p50 = scmp.eq.s32.totalorder %s21, 1
      %p51 = por %p49, %p50
      %p52 = scmp.ne.s32.totalorder %s41, %s42
      %p53 = scmp.eq.s32.totalorder %s21, 0
      %p54 = por %p52, %p53
      %p55 = scmp.ne.s32.totalorder %s41, %s42
      %p56 = scmp.eq.s32.totalorder %s22, 1
      %p57 = por %p55, %p56
      %p59 = scmp.ne.s32.totalorder %s42, %s58
      %p60 = scmp.eq.s32.totalorder %s22, 0
      %p61 = por %p59, %p60
      %s63 = sadd.s32 %s62, 1
      %p66 = scmp.eq.s32.totalorder %s16, 1
      %p67 = scmp.ne.s32.totalorder %s62, %s64
      %p68 = scmp.eq.s32.totalorder %s16, 0
      %p69 = por %p67, %p68
      %p70 = scmp.ne.s32.totalorder %s62, %s64
      %p71 = scmp.eq.s32.totalorder %s21, 1
      %p72 = por %p70, %p71
      %p73 = scmp.ne.s32.totalorder %s64, %s65
      %p74 = scmp.eq.s32.totalorder %s21, 0
      %p75 = por %p73, %p74
      %p76 = scmp.ne.s32.totalorder %s64, %s65
      %p77 = scmp.eq.s32.totalorder %s22, 1
      %p78 = por %p76, %p77
      %p80 = scmp.ne.s32.totalorder %s65, %s79
      %p81 = scmp.eq.s32.totalorder %s22, 0
      %p82 = por %p80, %p81
      %s84 = sadd.s32 %s83, 1
      %p87 = scmp.eq.s32.totalorder %s16, 1
      %p88 = scmp.ne.s32.totalorder %s83, %s85
      %p89 = scmp.eq.s32.totalorder %s16, 0
      %p90 = por %p88, %p89
      %p91 = scmp.ne.s32.totalorder %s83, %s85
      %p92 = scmp.eq.s32.totalorder %s21, 1
      %p93 = por %p91, %p92
      %p94 = scmp.ne.s32.totalorder %s85, %s86
      %p95 = scmp.eq.s32.totalorder %s21, 0
      %p96 = por %p94, %p95
      %p97 = scmp.ne.s32.totalorder %s85, %s86
      %p98 = scmp.eq.s32.totalorder %s22, 1
      %p99 = por %p97, %p98
      %p101 = scmp.ne.s32.totalorder %s86, %s100
      %p102 = scmp.eq.s32.totalorder %s22, 0
      %p103 = por %p101, %p102
      %s104 = ssub.s32 %s23, %s35
      %s105 = ssub.s32 %s24, %s31
      %s106 = sor.u32 %s104, %s105
      %p107 = scmp.eq.s32.totalorder %s106, 0
      %s109 = sadd.s32 %s108, 1
      %s110 = scalar_select %p107, %s108, %s109
      %p113 = pneg %p107
      %p114 = scmp.eq.s32.totalorder %s16, 1
      %p115 = por %p113, %p114
      %p116 = scmp.ne.s32.totalorder %s108, %s111
      %p117 = scmp.eq.s32.totalorder %s16, 0
      %p118 = por %p116, %p117
      %p119 = scmp.ne.s32.totalorder %s108, %s111
      %p120 = scmp.eq.s32.totalorder %s21, 1
      %p121 = por %p119, %p120
      %p122 = scmp.ne.s32.totalorder %s111, %s112
      %p123 = scmp.eq.s32.totalorder %s21, 0
      %p124 = por %p122, %p123
      %p125 = scmp.ne.s32.totalorder %s111, %s112
      %p126 = scmp.eq.s32.totalorder %s22, 1
      %p127 = por %p125, %p126
      %p129 = scmp.ne.s32.totalorder %s112, %s128
      %p130 = scmp.eq.s32.totalorder %s22, 0
      %p131 = por %p129, %p130
      %p132 = scmp.le.s32.totalorder 1, %s16
      %p133 = scmp.lt.s32.totalorder %s16, 3
      %p134 = pnand %p132, %p133
      %p135 = pneg %p134
      // Predicated region
      $region9: #{tpu_custom_call.1} parent=5 // pred_check
        _
      $region10: #{tpu_custom_call.1} parent=5 // pred_check_branch
        %137 = sbr.rel (%p134) target = $region12
      $region11: #{tpu_custom_call.1} parent=5 // pred_region
        %s138 = ssub.s32 %s16, 1
        // Predicated region
        $region13: #{tpu_custom_call.1} parent=11 // pred_check
          %p139 = pneg %p75
        $region14: #{tpu_custom_call.1} parent=11 // pred_check_branch
          %141 = sbr.rel (%p139) target = $region16
        $region15: #{tpu_custom_call.1} parent=11 // pred_region
          %143 = vsyncadd [#allocation6], 0
          %s144 = sshll.u32 %s1, 4
          %s145 = int_to_ptr.hbm [resolvable:$true] %s144
          %s146 = sshll.u32 [#allocation5], 4
          %s147 = int_to_ptr.vmem [resolvable:$true] %s146
          %152 = dma.hbm_to_vmem [thread:$0]  %s145, 384, %s147, [#allocation6], 128, 128, 8
        $region16: #{tpu_custom_call.1} parent=11 // pred_fallthru
          _
        // Predicated region
        $region17: #{tpu_custom_call.1} parent=11 // pred_check
          %p153 = pneg %p96
        $region18: #{tpu_custom_call.1} parent=11 // pred_check_branch
          %155 = sbr.rel (%p153) target = $region20
        $region19: #{tpu_custom_call.1} parent=11 // pred_region
          _
        $region20: #{tpu_custom_call.1} parent=11 // pred_fallthru
          _
      $region12: #{tpu_custom_call.1} parent=5 // pred_fallthru
        _
      %p156 = scmp.lt.s32.totalorder %s16, 2
      // Predicated region
      $region21: #{tpu_custom_call.1} parent=5 // pred_check
        %p157 = pneg %p156
      $region22: #{tpu_custom_call.1} parent=5 // pred_check_branch
        %159 = sbr.rel (%p157) target = $region24
      $region23: #{tpu_custom_call.1} parent=5 // pred_region
        // Predicated region
        $region25: #{tpu_custom_call.1} parent=23 // pred_check
          %p160 = pneg %p48
        $region26: #{tpu_custom_call.1} parent=23 // pred_check_branch
          %162 = sbr.rel (%p160) target = $region28
        $region27: #{tpu_custom_call.1} parent=23 // pred_region
          %s163 = sand.u32 %s38, 1
          %s164 = scalar_lea.sflag [#allocation3], %s163
          %s165 = sand.u32 %s38, 1
          %s166 = smul.addr %s165, 16
          %s167 = scalar_lea.vmem [#allocation2], %s166
          %169 = vsyncadd %s164, 0
          %s170 = smul.addr %s23, 2
          %s171 = smul.addr %s170, 8
          %s172 = scalar_lea.hbm %s0, %s171
          %s174 = sshll.u32 %s172, 4
          %s175 = int_to_ptr.hbm [resolvable:$true] %s174
          %s176 = sshll.u32 %s167, 4
          %s177 = int_to_ptr.vmem [resolvable:$true] %s176
          %179 = dma.hbm_to_vmem [thread:$0]  %s175, 256, %s177, %s164
        $region28: #{tpu_custom_call.1} parent=23 // pred_fallthru
          _
      $region24: #{tpu_custom_call.1} parent=5 // pred_fallthru
        _
      %p180 = scmp.le.s32.totalorder 1, %s16
      %p181 = scmp.lt.s32.totalorder %s16, 3
      %p182 = pnand %p180, %p181
      %p183 = pneg %p182
      // Predicated region
      $region29: #{tpu_custom_call.1} parent=5 // pred_check
        _
      $region30: #{tpu_custom_call.1} parent=5 // pred_check_branch
        %185 = sbr.rel (%p182) target = $region32
      $region31: #{tpu_custom_call.1} parent=5 // pred_region
        %s186 = ssub.s32 %s16, 1
        %s187 = sand.u32 %s41, 1
        %s188 = scalar_lea.sflag [#allocation3], %s187
        %s189 = sand.u32 %s41, 1
        %s190 = smul.addr %s189, 16
        %s191 = scalar_lea.vmem [#allocation2], %s190
        // Predicated region
        $region33: #{tpu_custom_call.1} parent=31 // pred_check
          %p192 = pneg %p54
        $region34: #{tpu_custom_call.1} parent=31 // pred_check_branch
          %194 = sbr.rel (%p192) target = $region36
        $region35: #{tpu_custom_call.1} parent=31 // pred_region
          %196 = dma.done %s188, 256
        $region36: #{tpu_custom_call.1} parent=31 // pred_fallthru
          _
        // Predicated region
        $region37: #{tpu_custom_call.1} parent=31 // pred_check
          %p197 = pneg %p75
        $region38: #{tpu_custom_call.1} parent=31 // pred_check_branch
          %199 = sbr.rel (%p197) target = $region40
        $region39: #{tpu_custom_call.1} parent=31 // pred_region
          %201 = dma.done [#allocation6], 384
        $region40: #{tpu_custom_call.1} parent=31 // pred_fallthru
          _
        %s202 = sand.u32 %s41, 1
        %s203 = scalar_lea.sflag [#allocation3], %s202
        %s204 = sand.u32 %s41, 1
        %s205 = smul.addr %s204, 16
        %s206 = scalar_lea.vmem [#allocation2], %s205
        %p207 = pneg %p54
        %p208 = pneg %p51
        %p209 = pneg %p75
        %p210 = pneg %p72
        %p211 = pneg %p96
        %p212 = pneg %p93
        %p213 = pneg %p124
        %p214 = pneg %p121
        %s215 = sand.u32 %s111, 1
        %s216 = scalar_lea.sflag [#allocation4], %s215
        %s217 = sand.u32 %s111, 1
        %s218 = smul.addr %s217, 8
        %s219 = scalar_lea.vmem [#allocation7], %s218
        %s220 = smul.u32 %s26, 128
        %s221 = sshra.s32 %s220, 7
        %s222 = sand.u32 %s220, 127
        %s223 = smul.addr %s221, 8
        %s224 = scalar_lea.vmem %s191, %s223 [#allocation2]
        %v225 = vld [vmem:[%s224] sm:$0xff]
        %v226 = vld [vmem:[%s224 + $0x8] sm:$0xff]
        %v227 = vld [vmem:[#allocation5] sm:$0xff]
        %s228 = scalar_lea.vmem [#allocation5], 8
        %v229 = vld [vmem:[%s228] sm:$0xff]
        %232 = vrot.lane.b32.xlu0 %v225, 127
        %v233 = vpop.permute.xlu0 %232
        %234 = vrot.lane.b32.xlu0 %v226, 127
        %v235 = vpop.permute.xlu0 %234
        %vm236 = vcmask 1039360
        %v237 = vsel %vm236, %v233, %v235
        %vm239 = vcmask 64512
        %v241 = vsel %vm239, %v229, 0
        %243 = vmatpush.msra.mxu0 0.0
        %244 = vmatpush.msra.mxu0 0.0
        %245 = vmatpush.msra.mxu0 0.0
        %246 = vmatpush.msra.mxu0 0.0
        %247 = vmatpush.msra.mxu0 0.0
        %248 = vmatpush.msra.mxu0 0.0
        %249 = vmatpush.msra.mxu0 0.0
        %250 = vmatpush.msra.mxu0 0.0
        %251 = vmatpush.msra.mxu0 0.0
        %252 = vmatpush.msra.mxu0 0.0
        %253 = vmatpush.msra.mxu0 0.0
        %254 = vmatpush.msra.mxu0 0.0
        %255 = vmatpush.msra.mxu0 0.0
        %256 = vmatpush.msra.mxu0 0.0
        %257 = vmatpush.msra.mxu0 0.0
        %258 = vmatpush.msra.mxu0 %v237
        %259 = vmatmul.f32.gmra.mxu0 %v241
        %v260 = vpop.f32.mrf.mxu0
        %v261 = vadd.f32 0.0, %v260
        %262 = vdwg.mxu0
        %v264 = vsel %vm239, %v227, 0
        %266 = vmatpush.msra.mxu0 0.0
        %267 = vmatpush.msra.mxu0 0.0
        %268 = vmatpush.msra.mxu0 0.0
        %269 = vmatpush.msra.mxu0 0.0
        %270 = vmatpush.msra.mxu0 0.0
        %271 = vmatpush.msra.mxu0 0.0
        %272 = vmatpush.msra.mxu0 0.0
        %273 = vmatpush.msra.mxu0 0.0
        %274 = vmatpush.msra.mxu0 0.0
        %275 = vmatpush.msra.mxu0 0.0
        %276 = vmatpush.msra.mxu0 0.0
        %277 = vmatpush.msra.mxu0 0.0
        %278 = vmatpush.msra.mxu0 0.0
        %279 = vmatpush.msra.mxu0 0.0
        %280 = vmatpush.msra.mxu0 0.0
        %281 = vmatpush.msra.mxu0 %v225
        %282 = vmatmul.f32.gmra.mxu0 %v264
        %v283 = vpop.f32.mrf.mxu0
        %v284 = vadd.f32 %v261, %v283
        %285 = vdwg.mxu0
        %s286 = scalar_lea.vmem [#allocation5], 16
        %v287 = vld [vmem:[%s286] sm:$0xff]
        %288 = vrot.lane.b32.xlu0 %v225, 126
        %v289 = vpop.permute.xlu0 %288
        %290 = vrot.lane.b32.xlu0 %v226, 126
        %v291 = vpop.permute.xlu0 %290
        %vm292 = vcmask 1031168
        %v293 = vsel %vm292, %v289, %v291
        %v296 = vsel %vm239, %v287, 0
        %298 = vmatpush.msra.mxu0 0.0
        %299 = vmatpush.msra.mxu0 0.0
        %300 = vmatpush.msra.mxu0 0.0
        %301 = vmatpush.msra.mxu0 0.0
        %302 = vmatpush.msra.mxu0 0.0
        %303 = vmatpush.msra.mxu0 0.0
        %304 = vmatpush.msra.mxu0 0.0
        %305 = vmatpush.msra.mxu0 0.0
        %306 = vmatpush.msra.mxu0 0.0
        %307 = vmatpush.msra.mxu0 0.0
        %308 = vmatpush.msra.mxu0 0.0
        %309 = vmatpush.msra.mxu0 0.0
        %310 = vmatpush.msra.mxu0 0.0
        %311 = vmatpush.msra.mxu0 0.0
        %312 = vmatpush.msra.mxu0 0.0
        %313 = vmatpush.msra.mxu0 %v293
        %314 = vmatmul.f32.gmra.mxu0 %v296
        %v315 = vpop.f32.mrf.mxu0
        %v316 = vadd.f32 0.0, %v315
        %317 = vdwg.mxu0
        %v318 = vadd.f32 %v284, %v316
        %v319 = vld [vmem:[%s2] sm:$0xff]
        %321 = vset.pattern.permute.xlu0 0
        %322 = vperm.xlu0 %321, %v319
        %v323 = vpop.permute.xlu0 %322
        %v325 = vadd.f32 %v318, %v323
        %v326 = vmax.f32 %v325, 0.0
        %327 = vst [vmem:[%s219] sm:$0xff] %v326
        %s328 = sand.u32 %s111, 1
        %s329 = scalar_lea.sflag [#allocation4], %s328
        %s330 = sand.u32 %s111, 1
        %s331 = smul.addr %s330, 8
        %s332 = scalar_lea.vmem [#allocation7], %s331
        // Predicated region
        $region41: #{tpu_custom_call.1} parent=31 // pred_check
          %p333 = pneg %p121
        $region42: #{tpu_custom_call.1} parent=31 // pred_check_branch
          %335 = sbr.rel (%p333) target = $region44
        $region43: #{tpu_custom_call.1} parent=31 // pred_region
          %337 = vsyncadd %s329, 0
          %s338 = sadd.s32 %s26, %s25
          %s339 = smul.addr %s338, 8
          %s340 = scalar_lea.hbm %s3, %s339
          %s342 = sshll.u32 %s332, 4
          %s343 = int_to_ptr.vmem [resolvable:$true] %s342
          %s344 = sshll.u32 %s340, 4
          %s345 = int_to_ptr.hbm [resolvable:$true] %s344
          %347 = dma.vmem_to_hbm [thread:$0]  %s343, 128, %s345, %s329
        $region44: #{tpu_custom_call.1} parent=31 // pred_fallthru
          _
      $region32: #{tpu_custom_call.1} parent=5 // pred_fallthru
        _
      %p348 = scmp.le.s32.totalorder 2, %s16
      // Predicated region
      $region45: #{tpu_custom_call.1} parent=5 // pred_check
        %p349 = pneg %p348
      $region46: #{tpu_custom_call.1} parent=5 // pred_check_branch
        %351 = sbr.rel (%p349) target = $region48
      $region47: #{tpu_custom_call.1} parent=5 // pred_region
        %s352 = ssub.s32 %s16, 2
        // Predicated region
        $region49: #{tpu_custom_call.1} parent=47 // pred_check
          %p353 = pneg %p127
        $region50: #{tpu_custom_call.1} parent=47 // pred_check_branch
          %355 = sbr.rel (%p353) target = $region52
        $region51: #{tpu_custom_call.1} parent=47 // pred_region
          %s356 = sand.u32 %s112, 1
          %s357 = scalar_lea.sflag [#allocation4], %s356
          %s358 = sand.u32 %s112, 1
          %s359 = smul.addr %s358, 8
          %s360 = scalar_lea.vmem [#allocation7], %s359
          %362 = dma.done %s357, 128
        $region52: #{tpu_custom_call.1} parent=47 // pred_fallthru
          _
      $region48: #{tpu_custom_call.1} parent=5 // pred_fallthru
        _
    $region6: #{tpu_custom_call.1} parent=1 // loop_footer
      %s20 = sadd.s32 1, %s16
    $region7: #{tpu_custom_call.1} parent=1 // loop_footer_branch
      %15 = sbr.rel target = $region3
    $region8: #{tpu_custom_call.1} parent=1 // loop_exit
      _
    %363 = vsyncpa [#allocation3], 1
    %s364 = scalar_lea.sflag [#allocation3], 1
    %365 = vsyncpa %s364, 1
    %366 = vsyncpa [#allocation6], 1
    %367 = vsyncpa [#allocation4], 1
    %s368 = scalar_lea.sflag [#allocation4], 1
    %369 = vsyncpa %s368, 1

</llo_original>
